<compile_context>
chip_gen: v7x
topology: tpu7x:2x2x1
jax: 0.10.0
libtpu: 0.0.40
codegen_flags: <defaults>
</compile_context>

<pallas_src>
import math

import jax
import jax.numpy as jnp
from jax.experimental import pallas as pl
from jax.experimental.pallas import tpu as pltpu

HIDDEN = 32
BATCH = 2
SEQ = 8


def _prepend_kernel(tok_ref, x_ref, o_ref):
    """tok_ref: (1, D); x_ref: (bt, S*D); o_ref: (bt, (S+1)*D)."""
    bt = x_ref.shape[0]
    d = tok_ref.shape[1]
    # Broadcast is hoisted once per invocation (not in any loop), so the
    # stride-0 sublane-broadcast load is not needed at these sizes.
    tok_rows = jnp.broadcast_to(tok_ref[...], (bt, d))
    # Single fused store: build the whole output row in registers, then write
    # it once — one store pass per vreg column, no second masked pass.
    o_ref[...] = jnp.concatenate([tok_rows, x_ref[...]], axis=-1)


def cls_token_pallas(embedding, token, *, batch_tile=None,
                     vmem_budget_bytes=16 << 20):
    """Prepend `token` along the sequence dim. embedding: (B, S, D); token: (D,)."""
    B, S, D = embedding.shape
    assert token.shape == (D,)
    token = token.astype(embedding.dtype)

    # Lane-dense 2-D views (row-major contiguous, reshape is free).
    x2d = embedding.reshape(B, S * D)
    tok2d = token.reshape(1, D)
    out_row = (S + 1) * D
    itemsize = jnp.dtype(embedding.dtype).itemsize
    row_bytes = (S * D + out_row) * itemsize  # input + output bytes per batch row

    out_shape = jax.ShapeDtypeStruct((B, out_row), embedding.dtype)

    if batch_tile is None and B * row_bytes <= (2 << 20):
        # Tiny problem: whole thing is VMEM-resident, one kernel invocation,
        # no grid (per-step overhead would dominate a few-KB copy).
        out2d = pl.pallas_call(
            _prepend_kernel,
            out_shape=out_shape,
            in_specs=[
                pl.BlockSpec(memory_space=pltpu.MemorySpace.VMEM),
                pl.BlockSpec(memory_space=pltpu.MemorySpace.VMEM),
            ],
            out_specs=pl.BlockSpec(memory_space=pltpu.MemorySpace.VMEM),
        )(tok2d, x2d)
    else:
        # Model-realistic sizes: pipeline over a batch grid.  Tile sized so the
        # double-buffered (input + output) tiles stay under a conservative VMEM
        # budget (safe for v7x's 32 MiB scoped default as well as v6e/v5e).
        if batch_tile is None:
            bt = vmem_budget_bytes // (2 * row_bytes)
            bt = max(8, min(1024, (bt // 8) * 8))
        else:
            bt = batch_tile
        bt = min(bt, B)
        grid = (pl.cdiv(B, bt),)

        out2d = pl.pallas_call(
            _prepend_kernel,
            out_shape=out_shape,
            grid_spec=pltpu.PrefetchScalarGridSpec(
                num_scalar_prefetch=0,
                grid=grid,
                in_specs=[
                    # Token: same tiny block every step (stays resident).
                    pl.BlockSpec((1, D), lambda i: (0, 0)),
                    pl.BlockSpec((bt, S * D), lambda i: (i, 0)),
                ],
                out_specs=pl.BlockSpec((bt, out_row), lambda i: (i, 0)),
            ),
            compiler_params=pltpu.CompilerParams(
                # Purely data-parallel over batch -> shard across TensorCores.
                dimension_semantics=("parallel",),
            ),
        )(tok2d, x2d)

    return out2d.reshape(B, S + 1, D)


def reference(embedding, token):
    """Pure-JAX reference matching the PyTorch forward."""
    B, S, D = embedding.shape
    tok = jnp.broadcast_to(token.astype(embedding.dtype).reshape(1, 1, D), (B, 1, D))
    return jnp.concatenate([tok, embedding], axis=1)


if __name__ == "__main__":
    key = jax.random.PRNGKey(0)
    kx, kt = jax.random.split(key)

    # Small shapes consistent with the module: batch=2, seq=8, hidden=32.
    x = jax.random.normal(kx, (BATCH, SEQ, HIDDEN), jnp.float32)

    # nn.Parameter(torch.empty(hidden_dim).uniform_(-1/sqrt(D), 1/sqrt(D)))
    bound = 1.0 / math.sqrt(HIDDEN)
    token = jax.random.uniform(
        kt, (HIDDEN,), jnp.float32, minval=-bound, maxval=bound
    )

    out = jax.block_until_ready(cls_token_pallas(x, token))
    ref = reference(x, token)
    assert out.shape == (BATCH, SEQ + 1, HIDDEN)
    assert jnp.array_equal(out, ref), (
        f"max abs err {jnp.max(jnp.abs(out - ref))}"
    )

    # Also exercise the gridded / pipelined path at a model-realistic size
    # in bf16 (batch tiles of 64, grid of 4, batch axis parallel).
    kx2, kt2 = jax.random.split(jax.random.PRNGKey(1))
    B2, S2, D2 = 256, 16, 128
    x2 = jax.random.normal(kx2, (B2, S2, D2), jnp.float32).astype(jnp.bfloat16)
    bound2 = 1.0 / math.sqrt(D2)
    token2 = jax.random.uniform(
        kt2, (D2,), jnp.float32, minval=-bound2, maxval=bound2
    ).astype(jnp.bfloat16)

    out2 = jax.block_until_ready(cls_token_pallas(x2, token2, batch_tile=64))
    ref2 = reference(x2, token2)
    assert out2.shape == (B2, S2 + 1, D2)
    assert jnp.array_equal(out2, ref2)

    print("KERNEL_OK")
</pallas_src>

<mosaic_0001>
module attributes {stable_mosaic.version = 11 : i64} {
  func.func @_prepend_kernel(%arg0: memref<1x32xf32, #tpu.memory_space<vmem>>, %arg1: memref<2x256xf32, #tpu.memory_space<vmem>>, %arg2: memref<2x288xf32, #tpu.memory_space<vmem>>) attributes {dimension_semantics = [], scalar_prefetch = 0 : i64, scratch_operands = 0 : i64, tpu.core_type = #tpu.core_type<tc>} {
    %c0 = arith.constant 0 : index
    %c0_0 = arith.constant 0 : index
    %0 = vector.load %arg0[%c0, %c0_0] : memref<1x32xf32, #tpu.memory_space<vmem>>, vector<1x32xf32>
    %1 = vector.shape_cast %0 : vector<1x32xf32> to vector<1x32xf32>
    %2 = vector.broadcast %1 : vector<1x32xf32> to vector<2x32xf32>
    %c0_1 = arith.constant 0 : index
    %c0_2 = arith.constant 0 : index
    %3 = vector.load %arg1[%c0_1, %c0_2] : memref<2x256xf32, #tpu.memory_space<vmem>>, vector<2x256xf32>
    %4 = tpu.concatenate %2, %3 in 1 : vector<2x32xf32>, vector<2x256xf32> -> vector<2x288xf32>
    %c0_3 = arith.constant 0 : index
    %c0_4 = arith.constant 0 : index
    %5 = vector.load %arg2[%c0_3, %c0_4] : memref<2x288xf32, #tpu.memory_space<vmem>>, vector<2x288xf32>
    tpu.vector_store %arg2[%c0_3, %c0_4], %4 {strides = array<i32>} : memref<2x288xf32, #tpu.memory_space<vmem>>, vector<2x288xf32>,
    return
  }
}

</mosaic_0001>

<llo_original>
// kernel: tpu_custom_call.1
$region0: #{tpu_custom_call.1}
  #allocation0 [shape = 'u32[]', space=smem, size = 0x4, offset = 0x4, fixed_abs, tag = 'smem constant byte address 0x4 - core index']
  #allocation1 [shape = 'u32[144,128]{1,0:T(1,128)}', space=vmem, size = 0x12000, scoped, tag = 'internal scratch']
  %s0 = inlined_call_operand.hbm [shape: f32[1,32], index: 0, kind: input, shape index: {}]
  %s1 = inlined_call_operand.hbm [shape: f32[2,256], index: 1, kind: input, shape index: {}]
  %s2 = inlined_call_operand.hbm [shape: f32[2,288], index: 2, kind: output, shape index: {}]
  %s3 = sld [smem:[#allocation0]]
  $region26: #{tpu_custom_call.1} parent=0
    _
  %s5 = ssub.s32 1, %s3
  %s6 = scalar_select 0, %s5, %s3
  $region1: #{tpu_custom_call.1} parent=0
    #allocation2 [shape = 'u8[512]{0}', space=vmem, size = 0x400, scoped, tag = 'input window, operand 0, single buffered']
    #allocation3 [shape = 's32[1]{0}', space=sflag, size = 0x4, scoped, tag = 'scoped memory for tpu_custom_call.1']
    #allocation4 [shape = 's32[1]{0}', space=sflag, size = 0x4, scoped, tag = 'scoped memory for tpu_custom_call.1']
    #allocation5 [shape = 'u8[2048]{0}', space=vmem, size = 0x800, scoped, tag = 'input window, operand 1, single buffered']
    #allocation6 [shape = 's32[1]{0}', space=sflag, size = 0x4, scoped, tag = 'scoped memory for tpu_custom_call.1']
    #allocation7 [shape = 'u8[3072]{0}', space=vmem, size = 0xc00, scoped, tag = 'output window, operand 0, single buffered']
    %7 = vsyncpa [#allocation3], 0
    %8 = vsyncpa [#allocation6], 0
    %9 = vsyncpa [#allocation4], 0
    // Predicated region
    $region2: #{tpu_custom_call.1} parent=1 // pred_check
      _
    $region3: #{tpu_custom_call.1} parent=1 // pred_check_branch
      %11 = sbr.rel (0) target = $region5
    $region4: #{tpu_custom_call.1} parent=1 // pred_region
      %s13 = ssub.s32 16, 16
      %14 = vsyncadd [#allocation3], %s13
      %s16 = sshll.u32 [#allocation2], 4
      %s17 = int_to_ptr.vmem [resolvable:$true] %s16
      %19 = dma.hbm_to_vmem [thread:$0]  %s0, 16, %s17, [#allocation3]
    $region5: #{tpu_custom_call.1} parent=1 // pred_fallthru
      _
    // Predicated region
    $region6: #{tpu_custom_call.1} parent=1 // pred_check
      _
    $region7: #{tpu_custom_call.1} parent=1 // pred_check_branch
      %21 = sbr.rel (0) target = $region9
    $region8: #{tpu_custom_call.1} parent=1 // pred_region
      %s23 = ssub.s32 64, 64
      %24 = vsyncadd [#allocation6], %s23
      %s26 = sshll.u32 [#allocation5], 4
      %s27 = int_to_ptr.vmem [resolvable:$true] %s26
      %29 = dma.hbm_to_vmem [thread:$0]  %s1, 64, %s27, [#allocation6]
    $region9: #{tpu_custom_call.1} parent=1 // pred_fallthru
      _
    // Predicated region
    $region10: #{tpu_custom_call.1} parent=1 // pred_check
      _
    $region11: #{tpu_custom_call.1} parent=1 // pred_check_branch
      %31 = sbr.rel (0) target = $region13
    $region12: #{tpu_custom_call.1} parent=1 // pred_region
      %32 = dma.done [#allocation3], 16
    $region13: #{tpu_custom_call.1} parent=1 // pred_fallthru
      _
    // Predicated region
    $region14: #{tpu_custom_call.1} parent=1 // pred_check
      _
    $region15: #{tpu_custom_call.1} parent=1 // pred_check_branch
      %34 = sbr.rel (0) target = $region17
    $region16: #{tpu_custom_call.1} parent=1 // pred_region
      %35 = dma.done [#allocation6], 64
    $region17: #{tpu_custom_call.1} parent=1 // pred_fallthru
      _
    %v36 = vld [vmem:[#allocation2] sm:$0x1]
    %v38 = vlaneseq
    %v39 = vshrl.u32 %v38, 7
    %v40 = vsub.s32 0, %v39
    %v41 = vrot.slane %v36, %v40
    %v43 = vld [vmem:[#allocation5] sm:$0xf]
    %v46 = vunpack.c.l.s4 1983009808
    %v47 = vunpack.c.0.s8 %v46
    %v48 = vlaneseq
    %v49 = vshrl.u32 %v48, 7
    %v50 = vsub.s32 %v47, %v49
    %v51 = vrot.slane %v43, %v50
    %v52 = vcombine.high %v51, %v51
    %53 = vrot.lane.b32.xlu0 %v51, 32
    %v54 = vpop.permute.xlu0 %53
    %55 = vrot.lane.b32.xlu0 %v52, 32
    %v56 = vpop.permute.xlu0 %55
    %vm57 = vcmask 261120
    %v58 = vsel %vm57, %v54, %v56
    %v60 = vsel %vm57, %v41, %v54
    %v62 = vcombine.low %v60, %v58
    %v64 = vunpack.c.l.s4 1983009808
    %v65 = vunpack.c.0.s8 %v64
    %v66 = vlaneseq
    %v67 = vshrl.u32 %v66, 7
    %v68 = vsub.s32 %v65, %v67
    %v69 = vrot.slane %v62, %v68
    %v71 = vunpack.c.l.s4 1983009808
    %v72 = vunpack.c.0.s8 %v71
    %v73 = vlaneseq
    %v74 = vshrl.u32 %v73, 7
    %v75 = vsub.s32 %v72, %v74
    %v76 = vrot.slane %v56, %v75
    %v77 = vcombine.low %v69, %v76
    %vm79 = vcmask 1041408
    %vm80 = vcmask 1043458
    %vm81 = vmor %vm80, %vm79
    %vm82 = vcmask 259076
    %vm83 = vmor %vm82, %vm81
    %84 = vst.msk [vmem:[#allocation7] sm:$0x3f] %vm83, %v77
    // Predicated region
    $region18: #{tpu_custom_call.1} parent=1 // pred_check
      _
    $region19: #{tpu_custom_call.1} parent=1 // pred_check_branch
      %86 = sbr.rel (0) target = $region21
    $region20: #{tpu_custom_call.1} parent=1 // pred_region
      %s88 = ssub.s32 96, 96
      %89 = vsyncadd [#allocation4], %s88
      %s91 = sshll.u32 [#allocation7], 4
      %s92 = int_to_ptr.vmem [resolvable:$true] %s91
      %94 = dma.vmem_to_hbm [thread:$0]  %s92, 96, %s2, [#allocation4]
    $region21: #{tpu_custom_call.1} parent=1 // pred_fallthru
      _
    // Predicated region
    $region22: #{tpu_custom_call.1} parent=1 // pred_check
      _
    $region23: #{tpu_custom_call.1} parent=1 // pred_check_branch
      %96 = sbr.rel (0) target = $region25
    $region24: #{tpu_custom_call.1} parent=1 // pred_region
      %97 = dma.done [#allocation4], 96
    $region25: #{tpu_custom_call.1} parent=1 // pred_fallthru
      _
    %98 = vsyncpa [#allocation3], 1
    %99 = vsyncpa [#allocation6], 1
    %100 = vsyncpa [#allocation4], 1

</llo_original>
